<compile_context>
chip_gen: v7x
topology: tpu7x:2x2x1
jax: 0.10.0
libtpu: 0.0.40
codegen_flags: <defaults>
</compile_context>

<pallas_src>
import jax
import jax.numpy as jnp
import numpy as np
from jax.experimental import pallas as pl
from jax.experimental.pallas import tpu as pltpu


def _mlp_tanh_kernel(xT_ref, wp_ref, bp_ref, o_ref):
    # xT_ref: (8, tm)   -- padded features on sublanes, batch tile on lanes
    # wp_ref: (3, 8, 8) -- packed PyTorch-layout weights (out_pad, in_pad), zero padded
    # bp_ref: (3, 8, 1) -- packed biases, zero padded
    h = xT_ref[...]                                   # (8, tm) f32
    for l in range(3):                                # unrolled at trace time
        w = wp_ref[l]                                 # (8, 8)
        b = bp_ref[l]                                 # (8, 1), broadcasts over lanes
        h = jnp.tanh(
            jnp.dot(w, h, preferred_element_type=jnp.float32) + b
        )
    o_ref[...] = h                                    # rows >= out_dim are exact zeros


def _round_up(x, m):
    return pl.cdiv(x, m) * m


def activation_net_forward(x, wp, bp, out_dim, tm=512):
    """x: (B, in_dim) f32. wp: (3, 8, 8) packed weights. bp: (3, 8, 1) packed biases."""
    B, in_dim = x.shape

    # Batch -> lanes: pad B up to a multiple of 128, pick a lane tile tm, pad to tm.
    B_lane = max(_round_up(B, 128), 128)
    tm = min(tm, B_lane)
    B_pad = _round_up(B_lane, tm)
    grid = (B_pad // tm,)

    # Layout plumbing in the wrapper: transpose + zero-pad to (8, B_pad).
    xT = jnp.zeros((8, B_pad), dtype=jnp.float32).at[:in_dim, :B].set(x.T)

    yT = pl.pallas_call(
        _mlp_tanh_kernel,
        out_shape=jax.ShapeDtypeStruct((8, B_pad), jnp.float32),
        grid=grid,
        in_specs=[
            pl.BlockSpec((8, tm), lambda i: (0, i)),          # batch-tiled input
            pl.BlockSpec(wp.shape, lambda i: (0, 0, 0)),      # weights: VMEM-resident
            pl.BlockSpec(bp.shape, lambda i: (0, 0, 0)),      # biases:  VMEM-resident
        ],
        out_specs=pl.BlockSpec((8, tm), lambda i: (0, i)),    # lane-dense output
        compiler_params=pltpu.CompilerParams(
            dimension_semantics=("parallel",),
        ),
    )(xT, wp, bp)

    return yT[:out_dim, :B].T                                 # (B, out_dim)


def make_params():
    # Exactly the deterministic init from Activation_Net.__init__ (PyTorch layout).
    _w1_init = np.array([[0.1, 0.2, 0.3, 0.4]] * 6, dtype=np.float32)   # (6, 4)
    _w2_init = np.array([[0.2, 0.2, 0.3, 0.1]] * 4, dtype=np.float32)   # (4, 4)
    _w3_init = np.array(
        [
            [0.1, 0.8, 0.3, 0.1],
            [0.2, 0.4, 0.2, 0.3],
            [0.3, 0.6, 0.5, 0.1],
            [0.4, 0.2, 0.3, 0.7],
        ],
        dtype=np.float32,
    )                                                                    # (4, 4)
    # l_i.weight = _wi_init.T -> (out_features, in_features)
    w1 = _w1_init.T          # (4, 6)
    w2 = _w2_init.T          # (4, 4)
    w3 = _w3_init.T          # (4, 4)
    b1 = np.zeros((4,), dtype=np.float32)
    b2 = np.zeros((4,), dtype=np.float32)
    b3 = np.zeros((4,), dtype=np.float32)
    return w1, b1, w2, b2, w3, b3


def pack_params(w1, b1, w2, b2, w3, b3):
    """Coalesce the 6 tiny parameters into two zero-padded constant buffers."""
    wp = np.zeros((3, 8, 8), dtype=np.float32)
    bp = np.zeros((3, 8, 1), dtype=np.float32)
    for l, (w, b) in enumerate(((w1, b1), (w2, b2), (w3, b3))):
        o, i = w.shape
        wp[l, :o, :i] = w
        bp[l, :o, 0] = b
    return jnp.asarray(wp), jnp.asarray(bp)


def reference_forward(x, w1, b1, w2, b2, w3, b3):
    # PyTorch nn.Linear: y = x @ weight.T + bias, then Tanh.
    h = jnp.tanh(x @ w1.T + b1)
    h = jnp.tanh(h @ w2.T + b2)
    return jnp.tanh(h @ w3.T + b3)


if __name__ == "__main__":
    in_dim, out_dim = 6, 4
    params = make_params()
    wp, bp = pack_params(*params)
    jparams = [jnp.asarray(p) for p in params]

    # Small deterministic input consistent with the module (batch=8, in_dim=6).
    key = jax.random.PRNGKey(0)
    x = jax.random.normal(key, (8, in_dim), dtype=jnp.float32)

    out = jax.block_until_ready(activation_net_forward(x, wp, bp, out_dim))
    ref = reference_forward(x, *jparams)
    np.testing.assert_allclose(np.asarray(out), np.asarray(ref), rtol=1e-5, atol=1e-5)

    # Larger batch: exercises multi-step "parallel" grid + lane padding path.
    x_big = jax.random.normal(jax.random.PRNGKey(1), (1000, in_dim), dtype=jnp.float32)
    out_big = jax.block_until_ready(activation_net_forward(x_big, wp, bp, out_dim))
    ref_big = reference_forward(x_big, *jparams)
    np.testing.assert_allclose(
        np.asarray(out_big), np.asarray(ref_big), rtol=1e-5, atol=1e-5
    )

    print("KERNEL_OK")
</pallas_src>

<mosaic_0001>
module attributes {stable_mosaic.version = 11 : i64} {
  func.func @_mlp_tanh_kernel(%arg0: i32, %arg1: memref<8x128xf32, #tpu.memory_space<vmem>>, %arg2: memref<3x8x8xf32, #tpu.memory_space<vmem>>, %arg3: memref<3x8x1xf32, #tpu.memory_space<vmem>>, %arg4: memref<8x128xf32, #tpu.memory_space<vmem>>) attributes {dimension_semantics = [#tpu.dimension_semantics<parallel>], iteration_bounds = array<i64: 1>, scalar_prefetch = 0 : i64, scratch_operands = 0 : i64, tpu.core_type = #tpu.core_type<tc>, window_params = [{transform_indices = @transform_0, window_bounds = array<i64: 8, 128>}, {pipeline_mode = #tpu.pipeline_mode<synchronous>, transform_indices = @transform_1, window_bounds = array<i64: 3, 8, 8>}, {pipeline_mode = #tpu.pipeline_mode<synchronous>, transform_indices = @transform_2, window_bounds = array<i64: 3, 8, 1>}, {transform_indices = @transform_3, window_bounds = array<i64: 8, 128>}]} {
    %c0 = arith.constant 0 : index
    %c0_0 = arith.constant 0 : index
    %0 = vector.load %arg1[%c0, %c0_0] : memref<8x128xf32, #tpu.memory_space<vmem>>, vector<8x128xf32>
    %c0_1 = arith.constant 0 : index
    %c0_2 = arith.constant 0 : index
    %c0_3 = arith.constant 0 : index
    %1 = vector.load %arg2[%c0_1, %c0_2, %c0_3] : memref<3x8x8xf32, #tpu.memory_space<vmem>>, vector<1x8x8xf32>
    %2 = vector.shape_cast %1 : vector<1x8x8xf32> to vector<8x8xf32>
    %c0_4 = arith.constant 0 : index
    %c0_5 = arith.constant 0 : index
    %c0_6 = arith.constant 0 : index
    %3 = vector.load %arg3[%c0_4, %c0_5, %c0_6] : memref<3x8x1xf32, #tpu.memory_space<vmem>>, vector<1x8x1xf32>
    %4 = vector.shape_cast %3 : vector<1x8x1xf32> to vector<8x1xf32>
    %cst = arith.constant dense<0.000000e+00> : vector<8x128xf32>
    %5 = tpu.matmul %2, %0, %cst {dimension_numbers = #tpu.dot_dimension_numbers<[1], [0], [0], [1], [0, 0, 1, 1], [], []>} : vector<8x8xf32>, vector<8x128xf32>, vector<8x128xf32> -> vector<8x128xf32>
    %6 = vector.broadcast %4 : vector<8x1xf32> to vector<8x128xf32>
    %7 = arith.addf %5, %6 : vector<8x128xf32>
    %8 = math.tanh %7 : vector<8x128xf32>
    %c1 = arith.constant 1 : index
    %c0_7 = arith.constant 0 : index
    %c0_8 = arith.constant 0 : index
    %9 = vector.load %arg2[%c1, %c0_7, %c0_8] : memref<3x8x8xf32, #tpu.memory_space<vmem>>, vector<1x8x8xf32>
    %10 = vector.shape_cast %9 : vector<1x8x8xf32> to vector<8x8xf32>
    %c1_9 = arith.constant 1 : index
    %c0_10 = arith.constant 0 : index
    %c0_11 = arith.constant 0 : index
    %11 = vector.load %arg3[%c1_9, %c0_10, %c0_11] : memref<3x8x1xf32, #tpu.memory_space<vmem>>, vector<1x8x1xf32>
    %12 = vector.shape_cast %11 : vector<1x8x1xf32> to vector<8x1xf32>
    %cst_12 = arith.constant dense<0.000000e+00> : vector<8x128xf32>
    %13 = tpu.matmul %10, %8, %cst_12 {dimension_numbers = #tpu.dot_dimension_numbers<[1], [0], [0], [1], [0, 0, 1, 1], [], []>} : vector<8x8xf32>, vector<8x128xf32>, vector<8x128xf32> -> vector<8x128xf32>
    %14 = vector.broadcast %12 : vector<8x1xf32> to vector<8x128xf32>
    %15 = arith.addf %13, %14 : vector<8x128xf32>
    %16 = math.tanh %15 : vector<8x128xf32>
    %c2 = arith.constant 2 : index
    %c0_13 = arith.constant 0 : index
    %c0_14 = arith.constant 0 : index
    %17 = vector.load %arg2[%c2, %c0_13, %c0_14] : memref<3x8x8xf32, #tpu.memory_space<vmem>>, vector<1x8x8xf32>
    %18 = vector.shape_cast %17 : vector<1x8x8xf32> to vector<8x8xf32>
    %c2_15 = arith.constant 2 : index
    %c0_16 = arith.constant 0 : index
    %c0_17 = arith.constant 0 : index
    %19 = vector.load %arg3[%c2_15, %c0_16, %c0_17] : memref<3x8x1xf32, #tpu.memory_space<vmem>>, vector<1x8x1xf32>
    %20 = vector.shape_cast %19 : vector<1x8x1xf32> to vector<8x1xf32>
    %cst_18 = arith.constant dense<0.000000e+00> : vector<8x128xf32>
    %21 = tpu.matmul %18, %16, %cst_18 {dimension_numbers = #tpu.dot_dimension_numbers<[1], [0], [0], [1], [0, 0, 1, 1], [], []>} : vector<8x8xf32>, vector<8x128xf32>, vector<8x128xf32> -> vector<8x128xf32>
    %22 = vector.broadcast %20 : vector<8x1xf32> to vector<8x128xf32>
    %23 = arith.addf %21, %22 : vector<8x128xf32>
    %24 = math.tanh %23 : vector<8x128xf32>
    %c0_19 = arith.constant 0 : index
    %c0_20 = arith.constant 0 : index
    %25 = vector.load %arg4[%c0_19, %c0_20] : memref<8x128xf32, #tpu.memory_space<vmem>>, vector<8x128xf32>
    tpu.vector_store %arg4[%c0_19, %c0_20], %24 {strides = array<i32>} : memref<8x128xf32, #tpu.memory_space<vmem>>, vector<8x128xf32>,
    return
  }
  func.func @transform_0(%arg0: i32) -> (i32, i32) {
    %c0_i32 = arith.constant 0 : i32
    %c0_i32_0 = arith.constant 0 : i32
    return %c0_i32, %arg0 : i32, i32
  }
  func.func @transform_1(%arg0: i32) -> (i32, i32, i32) {
    %c0_i32 = arith.constant 0 : i32
    %c0_i32_0 = arith.constant 0 : i32
    %c0_i32_1 = arith.constant 0 : i32
    %c0_i32_2 = arith.constant 0 : i32
    return %c0_i32, %c0_i32_0, %c0_i32_1 : i32, i32, i32
  }
  func.func @transform_2(%arg0: i32) -> (i32, i32, i32) {
    %c0_i32 = arith.constant 0 : i32
    %c0_i32_0 = arith.constant 0 : i32
    %c0_i32_1 = arith.constant 0 : i32
    %c0_i32_2 = arith.constant 0 : i32
    return %c0_i32, %c0_i32_0, %c0_i32_1 : i32, i32, i32
  }
  func.func @transform_3(%arg0: i32) -> (i32, i32) {
    %c0_i32 = arith.constant 0 : i32
    %c0_i32_0 = arith.constant 0 : i32
    return %c0_i32, %arg0 : i32, i32
  }
}

</mosaic_0001>

<llo_original>
// kernel: tpu_custom_call.1
$region0: #{tpu_custom_call.1}
  #allocation0 [shape = 'u32[]', space=smem, size = 0x4, offset = 0x4, fixed_abs, tag = 'smem constant byte address 0x4 - core index']
  #allocation1 [shape = 'u32[144,128]{1,0:T(1,128)}', space=vmem, size = 0x12000, scoped, tag = 'internal scratch']
  %s0 = inlined_call_operand.hbm [shape: f32[8,128], index: 0, kind: input, shape index: {}]
  %s1 = inlined_call_operand.vmem [shape: f32[3,8,8], index: 1, kind: input, shape index: {}]
  %s2 = inlined_call_operand.vmem [shape: f32[3,8,1], index: 2, kind: input, shape index: {}]
  %s3 = inlined_call_operand.hbm [shape: f32[8,128], index: 3, kind: output, shape index: {}]
  %s4 = sld [smem:[#allocation0]]
  $region26: #{tpu_custom_call.1} parent=0
    _
  %s6 = ssub.s32 1, %s4
  %s7 = scalar_select 0, %s6, %s4
  $region1: #{tpu_custom_call.1} parent=0
    #allocation2 [shape = 'u8[4096]{0}', space=vmem, size = 0x1000, scoped, tag = 'input window, operand 0, single buffered']
    #allocation3 [shape = 's32[1]{0}', space=sflag, size = 0x4, scoped, tag = 'scoped memory for tpu_custom_call.1']
    #allocation4 [shape = 's32[1]{0}', space=sflag, size = 0x4, scoped, tag = 'scoped memory for tpu_custom_call.1']
    #allocation5 [shape = 'u8[4096]{0}', space=vmem, size = 0x1000, scoped, tag = 'output window, operand 0, single buffered']
    %8 = vsyncpa [#allocation3], 0
    %9 = vsyncpa [#allocation4], 0
    // Predicated region
    $region2: #{tpu_custom_call.1} parent=1 // pred_check
      _
    $region3: #{tpu_custom_call.1} parent=1 // pred_check_branch
      %11 = sbr.rel (0) target = $region5
    $region4: #{tpu_custom_call.1} parent=1 // pred_region
      %s13 = ssub.s32 128, 128
      %14 = vsyncadd [#allocation3], %s13
      %s16 = sshll.u32 [#allocation2], 4
      %s17 = int_to_ptr.vmem [resolvable:$true] %s16
      %19 = dma.hbm_to_vmem [thread:$0]  %s0, 128, %s17, [#allocation3]
    $region5: #{tpu_custom_call.1} parent=1 // pred_fallthru
      _
    // Predicated region
    $region6: #{tpu_custom_call.1} parent=1 // pred_check
      _
    $region7: #{tpu_custom_call.1} parent=1 // pred_check_branch
      %21 = sbr.rel (0) target = $region9
    $region8: #{tpu_custom_call.1} parent=1 // pred_region
      _
    $region9: #{tpu_custom_call.1} parent=1 // pred_fallthru
      _
    // Predicated region
    $region10: #{tpu_custom_call.1} parent=1 // pred_check
      _
    $region11: #{tpu_custom_call.1} parent=1 // pred_check_branch
      %23 = sbr.rel (0) target = $region13
    $region12: #{tpu_custom_call.1} parent=1 // pred_region
      _
    $region13: #{tpu_custom_call.1} parent=1 // pred_fallthru
      _
    // Predicated region
    $region14: #{tpu_custom_call.1} parent=1 // pred_check
      _
    $region15: #{tpu_custom_call.1} parent=1 // pred_check_branch
      %25 = sbr.rel (0) target = $region17
    $region16: #{tpu_custom_call.1} parent=1 // pred_region
      %26 = dma.done [#allocation3], 128
    $region17: #{tpu_custom_call.1} parent=1 // pred_fallthru
      _
    %v27 = vld [vmem:[#allocation2] sm:$0xff]
    %v28 = vld [vmem:[%s1] sm:$0xff]
    %v29 = vld [vmem:[%s2] sm:$0xff]
    %31 = vset.pattern.permute.xlu0 0
    %32 = vperm.xlu0 %31, %v29
    %v33 = vpop.permute.xlu0 %32
    %vm35 = vcmask 64512
    %v37 = vsel %vm35, %v28, 0
    %39 = vmatprep.subr.mxu0 0.0
    %40 = vmatpush1.msra.mxu0 %v27
    %41 = vmatprep.subr.mxu0 0.0
    %42 = vmatpush1.msra.mxu0 0.0
    %43 = vmatprep.subr.mxu0 0.0
    %44 = vmatpush1.msra.mxu0 0.0
    %45 = vmatprep.subr.mxu0 0.0
    %46 = vmatpush1.msra.mxu0 0.0
    %47 = vmatprep.subr.mxu0 0.0
    %48 = vmatpush1.msra.mxu0 0.0
    %49 = vmatprep.subr.mxu0 0.0
    %50 = vmatpush1.msra.mxu0 0.0
    %51 = vmatprep.subr.mxu0 0.0
    %52 = vmatpush1.msra.mxu0 0.0
    %53 = vmatprep.subr.mxu0 0.0
    %54 = vmatpush1.msra.mxu0 0.0
    %55 = vmatprep.subr.mxu0 0.0
    %56 = vmatpush1.msra.mxu0 0.0
    %57 = vmatprep.subr.mxu0 0.0
    %58 = vmatpush1.msra.mxu0 0.0
    %59 = vmatprep.subr.mxu0 0.0
    %60 = vmatpush1.msra.mxu0 0.0
    %61 = vmatprep.subr.mxu0 0.0
    %62 = vmatpush1.msra.mxu0 0.0
    %63 = vmatprep.subr.mxu0 0.0
    %64 = vmatpush1.msra.mxu0 0.0
    %65 = vmatprep.subr.mxu0 0.0
    %66 = vmatpush1.msra.mxu0 0.0
    %67 = vmatprep.subr.mxu0 0.0
    %68 = vmatpush1.msra.mxu0 0.0
    %69 = vmatprep.subr.mxu0 0.0
    %70 = vmatpush1.msra.mxu0 0.0
    %71 = vmatprep.subr.mxu0 0.0
    %72 = vmatpush1.msra.mxu0 0.0
    %73 = vmatprep.subr.mxu0 0.0
    %74 = vmatpush1.msra.mxu0 0.0
    %75 = vmatprep.subr.mxu0 0.0
    %76 = vmatpush1.msra.mxu0 0.0
    %77 = vmatprep.subr.mxu0 0.0
    %78 = vmatpush1.msra.mxu0 0.0
    %79 = vmatprep.subr.mxu0 0.0
    %80 = vmatpush1.msra.mxu0 0.0
    %81 = vmatprep.subr.mxu0 0.0
    %82 = vmatpush1.msra.mxu0 0.0
    %83 = vmatprep.subr.mxu0 0.0
    %84 = vmatpush1.msra.mxu0 0.0
    %85 = vmatprep.subr.mxu0 0.0
    %86 = vmatpush1.msra.mxu0 0.0
    %87 = vmatprep.subr.mxu0 0.0
    %88 = vmatpush1.msra.mxu0 0.0
    %89 = vmatprep.subr.mxu0 0.0
    %90 = vmatpush1.msra.mxu0 0.0
    %91 = vmatprep.subr.mxu0 0.0
    %92 = vmatpush1.msra.mxu0 0.0
    %93 = vmatprep.subr.mxu0 0.0
    %94 = vmatpush1.msra.mxu0 0.0
    %95 = vmatprep.subr.mxu0 0.0
    %96 = vmatpush1.msra.mxu0 0.0
    %97 = vmatprep.subr.mxu0 0.0
    %98 = vmatpush1.msra.mxu0 0.0
    %99 = vmatprep.subr.mxu0 0.0
    %100 = vmatpush1.msra.mxu0 0.0
    %101 = vmatprep.subr.mxu0 0.0
    %102 = vmatpush1.msra.mxu0 0.0
    %103 = vmatprep.mubr.f32.mxu0 0.0
    %104 = vmatmul.mubr.f32.gmra.mrb[0].mxu0 %v37
    %v105 = vpop.f32.mrb[0].mxu0
    %v106 = vadd.f32 %v33, %v105
    %v107 = vpop.f32.mrb[0].mxu0
    %108 = vdwg.mxu0
    %v109 = vtanh.pop %v106
    %s110 = scalar_lea.vmem %s1, 8
    %v111 = vld [vmem:[%s110] sm:$0xff]
    %s112 = scalar_lea.vmem %s2, 8
    %v113 = vld [vmem:[%s112] sm:$0xff]
    %115 = vset.pattern.permute.xlu0 0
    %116 = vperm.xlu0 %115, %v113
    %v117 = vpop.permute.xlu0 %116
    %v120 = vsel %vm35, %v111, 0
    %122 = vmatprep.subr.mxu0 0.0
    %123 = vmatpush1.msra.mxu0 %v109
    %124 = vmatprep.subr.mxu0 0.0
    %125 = vmatpush1.msra.mxu0 0.0
    %126 = vmatprep.subr.mxu0 0.0
    %127 = vmatpush1.msra.mxu0 0.0
    %128 = vmatprep.subr.mxu0 0.0
    %129 = vmatpush1.msra.mxu0 0.0
    %130 = vmatprep.subr.mxu0 0.0
    %131 = vmatpush1.msra.mxu0 0.0
    %132 = vmatprep.subr.mxu0 0.0
    %133 = vmatpush1.msra.mxu0 0.0
    %134 = vmatprep.subr.mxu0 0.0
    %135 = vmatpush1.msra.mxu0 0.0
    %136 = vmatprep.subr.mxu0 0.0
    %137 = vmatpush1.msra.mxu0 0.0
    %138 = vmatprep.subr.mxu0 0.0
    %139 = vmatpush1.msra.mxu0 0.0
    %140 = vmatprep.subr.mxu0 0.0
    %141 = vmatpush1.msra.mxu0 0.0
    %142 = vmatprep.subr.mxu0 0.0
    %143 = vmatpush1.msra.mxu0 0.0
    %144 = vmatprep.subr.mxu0 0.0
    %145 = vmatpush1.msra.mxu0 0.0
    %146 = vmatprep.subr.mxu0 0.0
    %147 = vmatpush1.msra.mxu0 0.0
    %148 = vmatprep.subr.mxu0 0.0
    %149 = vmatpush1.msra.mxu0 0.0
    %150 = vmatprep.subr.mxu0 0.0
    %151 = vmatpush1.msra.mxu0 0.0
    %152 = vmatprep.subr.mxu0 0.0
    %153 = vmatpush1.msra.mxu0 0.0
    %154 = vmatprep.subr.mxu0 0.0
    %155 = vmatpush1.msra.mxu0 0.0
    %156 = vmatprep.subr.mxu0 0.0
    %157 = vmatpush1.msra.mxu0 0.0
    %158 = vmatprep.subr.mxu0 0.0
    %159 = vmatpush1.msra.mxu0 0.0
    %160 = vmatprep.subr.mxu0 0.0
    %161 = vmatpush1.msra.mxu0 0.0
    %162 = vmatprep.subr.mxu0 0.0
    %163 = vmatpush1.msra.mxu0 0.0
    %164 = vmatprep.subr.mxu0 0.0
    %165 = vmatpush1.msra.mxu0 0.0
    %166 = vmatprep.subr.mxu0 0.0
    %167 = vmatpush1.msra.mxu0 0.0
    %168 = vmatprep.subr.mxu0 0.0
    %169 = vmatpush1.msra.mxu0 0.0
    %170 = vmatprep.subr.mxu0 0.0
    %171 = vmatpush1.msra.mxu0 0.0
    %172 = vmatprep.subr.mxu0 0.0
    %173 = vmatpush1.msra.mxu0 0.0
    %174 = vmatprep.subr.mxu0 0.0
    %175 = vmatpush1.msra.mxu0 0.0
    %176 = vmatprep.subr.mxu0 0.0
    %177 = vmatpush1.msra.mxu0 0.0
    %178 = vmatprep.subr.mxu0 0.0
    %179 = vmatpush1.msra.mxu0 0.0
    %180 = vmatprep.subr.mxu0 0.0
    %181 = vmatpush1.msra.mxu0 0.0
    %182 = vmatprep.subr.mxu0 0.0
    %183 = vmatpush1.msra.mxu0 0.0
    %184 = vmatprep.subr.mxu0 0.0
    %185 = vmatpush1.msra.mxu0 0.0
    %186 = vmatprep.mubr.f32.mxu0 0.0
    %187 = vmatmul.mubr.f32.gmra.mrb[0].mxu0 %v120
    %v188 = vpop.f32.mrb[0].mxu0
    %v189 = vadd.f32 %v117, %v188
    %v190 = vpop.f32.mrb[0].mxu0
    %191 = vdwg.mxu0
    %v192 = vtanh.pop %v189
    %s193 = scalar_lea.vmem %s1, 16
    %v194 = vld [vmem:[%s193] sm:$0xff]
    %s195 = scalar_lea.vmem %s2, 16
    %v196 = vld [vmem:[%s195] sm:$0xff]
    %198 = vset.pattern.permute.xlu0 0
    %199 = vperm.xlu0 %198, %v196
    %v200 = vpop.permute.xlu0 %199
    %v203 = vsel %vm35, %v194, 0
    %205 = vmatprep.subr.mxu0 0.0
    %206 = vmatpush1.msra.mxu0 %v192
    %207 = vmatprep.subr.mxu0 0.0
    %208 = vmatpush1.msra.mxu0 0.0
    %209 = vmatprep.subr.mxu0 0.0
    %210 = vmatpush1.msra.mxu0 0.0
    %211 = vmatprep.subr.mxu0 0.0
    %212 = vmatpush1.msra.mxu0 0.0
    %213 = vmatprep.subr.mxu0 0.0
    %214 = vmatpush1.msra.mxu0 0.0
    %215 = vmatprep.subr.mxu0 0.0
    %216 = vmatpush1.msra.mxu0 0.0
    %217 = vmatprep.subr.mxu0 0.0
    %218 = vmatpush1.msra.mxu0 0.0
    %219 = vmatprep.subr.mxu0 0.0
    %220 = vmatpush1.msra.mxu0 0.0
    %221 = vmatprep.subr.mxu0 0.0
    %222 = vmatpush1.msra.mxu0 0.0
    %223 = vmatprep.subr.mxu0 0.0
    %224 = vmatpush1.msra.mxu0 0.0
    %225 = vmatprep.subr.mxu0 0.0
    %226 = vmatpush1.msra.mxu0 0.0
    %227 = vmatprep.subr.mxu0 0.0
    %228 = vmatpush1.msra.mxu0 0.0
    %229 = vmatprep.subr.mxu0 0.0
    %230 = vmatpush1.msra.mxu0 0.0
    %231 = vmatprep.subr.mxu0 0.0
    %232 = vmatpush1.msra.mxu0 0.0
    %233 = vmatprep.subr.mxu0 0.0
    %234 = vmatpush1.msra.mxu0 0.0
    %235 = vmatprep.subr.mxu0 0.0
    %236 = vmatpush1.msra.mxu0 0.0
    %237 = vmatprep.subr.mxu0 0.0
    %238 = vmatpush1.msra.mxu0 0.0
    %239 = vmatprep.subr.mxu0 0.0
    %240 = vmatpush1.msra.mxu0 0.0
    %241 = vmatprep.subr.mxu0 0.0
    %242 = vmatpush1.msra.mxu0 0.0
    %243 = vmatprep.subr.mxu0 0.0
    %244 = vmatpush1.msra.mxu0 0.0
    %245 = vmatprep.subr.mxu0 0.0
    %246 = vmatpush1.msra.mxu0 0.0
    %247 = vmatprep.subr.mxu0 0.0
    %248 = vmatpush1.msra.mxu0 0.0
    %249 = vmatprep.subr.mxu0 0.0
    %250 = vmatpush1.msra.mxu0 0.0
    %251 = vmatprep.subr.mxu0 0.0
    %252 = vmatpush1.msra.mxu0 0.0
    %253 = vmatprep.subr.mxu0 0.0
    %254 = vmatpush1.msra.mxu0 0.0
    %255 = vmatprep.subr.mxu0 0.0
    %256 = vmatpush1.msra.mxu0 0.0
    %257 = vmatprep.subr.mxu0 0.0
    %258 = vmatpush1.msra.mxu0 0.0
    %259 = vmatprep.subr.mxu0 0.0
    %260 = vmatpush1.msra.mxu0 0.0
    %261 = vmatprep.subr.mxu0 0.0
    %262 = vmatpush1.msra.mxu0 0.0
    %263 = vmatprep.subr.mxu0 0.0
    %264 = vmatpush1.msra.mxu0 0.0
    %265 = vmatprep.subr.mxu0 0.0
    %266 = vmatpush1.msra.mxu0 0.0
    %267 = vmatprep.subr.mxu0 0.0
    %268 = vmatpush1.msra.mxu0 0.0
    %269 = vmatprep.mubr.f32.mxu0 0.0
    %270 = vmatmul.mubr.f32.gmra.mrb[0].mxu0 %v203
    %v271 = vpop.f32.mrb[0].mxu0
    %v272 = vadd.f32 %v200, %v271
    %v273 = vpop.f32.mrb[0].mxu0
    %274 = vdwg.mxu0
    %v275 = vtanh.pop %v272
    %276 = vst [vmem:[#allocation5] sm:$0xff] %v275
    // Predicated region
    $region18: #{tpu_custom_call.1} parent=1 // pred_check
      _
    $region19: #{tpu_custom_call.1} parent=1 // pred_check_branch
      %278 = sbr.rel (0) target = $region21
    $region20: #{tpu_custom_call.1} parent=1 // pred_region
      %s280 = ssub.s32 128, 128
      %281 = vsyncadd [#allocation4], %s280
      %s283 = sshll.u32 [#allocation5], 4
      %s284 = int_to_ptr.vmem [resolvable:$true] %s283
      %286 = dma.vmem_to_hbm [thread:$0]  %s284, 128, %s3, [#allocation4]
    $region21: #{tpu_custom_call.1} parent=1 // pred_fallthru
      _
    // Predicated region
    $region22: #{tpu_custom_call.1} parent=1 // pred_check
      _
    $region23: #{tpu_custom_call.1} parent=1 // pred_check_branch
      %288 = sbr.rel (0) target = $region25
    $region24: #{tpu_custom_call.1} parent=1 // pred_region
      %289 = dma.done [#allocation4], 128
    $region25: #{tpu_custom_call.1} parent=1 // pred_fallthru
      _
    %290 = vsyncpa [#allocation3], 1
    %291 = vsyncpa [#allocation4], 1

</llo_original>
